<compile_context>
chip_gen: v7x
topology: tpu7x:2x2x1
jax: 0.10.0
libtpu: 0.0.40
codegen_flags: <defaults>
</compile_context>

<pallas_src>
import jax
import jax.numpy as jnp
from jax.experimental import pallas as pl
from jax.experimental.pallas import tpu as pltpu


def _embed_kernel(x_ref, mask_ref, w_ref, b_ref, o_ref):
    x = x_ref[...]          # (TB, S, H_in) f32
    m = mask_ref[...]       # (TB, S)       f32
    w = w_ref[...]          # (H_in, H_out) bf16  (VMEM-resident across grid)
    b = b_ref[...]          # (1, H_out)    f32   (VMEM-resident across grid)

    # Masked mean pooling of the *inputs* (pool-before-project: exact for a
    # linear backbone).  At production S this reduction can be expressed as an
    # MXU contraction einsum('bs,bsh->bh'); at these shapes VPU mul+sum is fine.
    summed = jnp.sum(x * m[:, :, None], axis=1)                    # (TB, H_in)
    counts = jnp.maximum(jnp.sum(m, axis=1, keepdims=True), 1e-9)  # (TB, 1)
    pooled_x = summed * pl.reciprocal(counts, approx=True)         # EUP recip

    # Projection on the MXU: bf16 inputs, f32 accumulation; bias once per row.
    pooled = jnp.dot(
        pooled_x.astype(jnp.bfloat16), w, preferred_element_type=jnp.float32
    ) + b                                                          # (TB, H_out)

    # L2 normalization of the sentence embedding (f32).
    inv_norm = jax.lax.rsqrt(
        jnp.sum(pooled * pooled, axis=-1, keepdims=True) + 1e-12
    )
    o_ref[...] = (pooled * inv_norm).astype(o_ref.dtype)


def base_forward(x, attention_mask, weight, bias, *, batch_block=8):
    """Pallas-backed forward: masked mean pool -> project (bf16 MXU) -> L2 norm."""
    B, S, H_in = x.shape
    H_out = weight.shape[1]
    assert B % batch_block == 0, "batch must be divisible by the batch tile"
    assert H_out % 128 == 0, "keep the output lane-dense (multiple of 128)"

    w_bf16 = weight.astype(jnp.bfloat16)   # halve weight DMA bytes, feed MXU bf16

    flops = 2 * B * S * H_in + 2 * B * H_in * H_out
    bytes_accessed = (
        x.size * 4 + attention_mask.size * 4 + w_bf16.size * 2
        + bias.size * 4 + B * H_out * 4
    )

    return pl.pallas_call(
        _embed_kernel,
        out_shape=jax.ShapeDtypeStruct((B, H_out), jnp.float32),
        grid_spec=pltpu.PrefetchScalarGridSpec(
            num_scalar_prefetch=0,
            grid=(B // batch_block,),
            in_specs=[
                pl.BlockSpec((batch_block, S, H_in), lambda i: (i, 0, 0)),
                pl.BlockSpec((batch_block, S), lambda i: (i, 0)),
                pl.BlockSpec((H_in, H_out), lambda i: (0, 0)),   # resident weight
                pl.BlockSpec((1, H_out), lambda i: (0, 0)),      # resident bias
            ],
            out_specs=pl.BlockSpec((batch_block, H_out), lambda i: (i, 0)),
        ),
        compiler_params=pltpu.CompilerParams(
            dimension_semantics=("parallel",),   # shards batch across v7x's 2 TCs
        ),
        cost_estimate=pl.CostEstimate(
            flops=flops, transcendentals=2 * B, bytes_accessed=bytes_accessed
        ),
    )(x, attention_mask, w_bf16, bias)


def _reference(x, attention_mask, weight, bias):
    # Original module semantics (f32): project every token, mask mean pool,
    # L2 normalize.
    h = jnp.einsum("bsh,hd->bsd", x, weight) + bias[None, :, :]
    mm = attention_mask[..., None]
    pooled = jnp.sum(h * mm, axis=1) / jnp.maximum(
        jnp.sum(attention_mask, axis=1, keepdims=True), 1e-9
    )
    return pooled / jnp.sqrt(jnp.sum(pooled * pooled, axis=-1, keepdims=True) + 1e-12)


if __name__ == "__main__":
    # Small shapes; H_out chosen lane-dense (multiple of 128).
    B, S, H_in, H_out = 16, 8, 32, 128

    key = jax.random.PRNGKey(0)
    k_x, k_w, k_b = jax.random.split(key, 3)

    x = jax.random.normal(k_x, (B, S, H_in), dtype=jnp.float32)
    # Deterministic attention mask: row b has (b % S) + 1 valid tokens.
    lengths = (jnp.arange(B) % S) + 1
    attention_mask = (jnp.arange(S)[None, :] < lengths[:, None]).astype(jnp.float32)
    # Deterministic synthetic "backbone" parameters (not a checkpoint load).
    weight = jax.random.normal(k_w, (H_in, H_out), dtype=jnp.float32) * 0.05
    bias = jax.random.normal(k_b, (1, H_out), dtype=jnp.float32) * 0.01

    out = jax.block_until_ready(base_forward(x, attention_mask, weight, bias))

    ref = _reference(x, attention_mask, weight, bias)
    assert out.shape == (B, H_out)
    # Loose tolerance: kernel runs the projection in bf16 on the MXU.
    max_err = jnp.max(jnp.abs(out - ref))
    assert jnp.allclose(out, ref, atol=2e-2, rtol=2e-2), (
        f"mismatch vs reference (max abs err {max_err})"
    )

    print("KERNEL_OK")
</pallas_src>

<mosaic_0001>
module attributes {stable_mosaic.version = 11 : i64} {
  func.func @_embed_kernel(%arg0: i32, %arg1: memref<8x8x32xf32, #tpu.memory_space<vmem>>, %arg2: memref<8x8xf32, #tpu.memory_space<vmem>>, %arg3: memref<32x128xbf16, #tpu.memory_space<vmem>>, %arg4: memref<1x128xf32, #tpu.memory_space<vmem>>, %arg5: memref<8x128xf32, #tpu.memory_space<vmem>>) attributes {dimension_semantics = [#tpu.dimension_semantics<parallel>], iteration_bounds = array<i64: 2>, scalar_prefetch = 0 : i64, scratch_operands = 0 : i64, tpu.core_type = #tpu.core_type<tc>, window_params = [{transform_indices = @transform_0, window_bounds = array<i64: 8, 8, 32>}, {transform_indices = @transform_1, window_bounds = array<i64: 8, 8>}, {pipeline_mode = #tpu.pipeline_mode<synchronous>, transform_indices = @transform_2, window_bounds = array<i64: 32, 128>}, {pipeline_mode = #tpu.pipeline_mode<synchronous>, transform_indices = @transform_3, window_bounds = array<i64: 1, 128>}, {transform_indices = @transform_4, window_bounds = array<i64: 8, 128>}]} {
    %c0 = arith.constant 0 : index
    %c0_0 = arith.constant 0 : index
    %c0_1 = arith.constant 0 : index
    %0 = vector.load %arg1[%c0, %c0_0, %c0_1] : memref<8x8x32xf32, #tpu.memory_space<vmem>>, vector<8x8x32xf32>
    %c0_2 = arith.constant 0 : index
    %c0_3 = arith.constant 0 : index
    %1 = vector.load %arg2[%c0_2, %c0_3] : memref<8x8xf32, #tpu.memory_space<vmem>>, vector<8x8xf32>
    %c0_4 = arith.constant 0 : index
    %c0_5 = arith.constant 0 : index
    %2 = vector.load %arg3[%c0_4, %c0_5] : memref<32x128xbf16, #tpu.memory_space<vmem>>, vector<32x128xbf16>
    %c0_6 = arith.constant 0 : index
    %c0_7 = arith.constant 0 : index
    %3 = vector.load %arg4[%c0_6, %c0_7] : memref<1x128xf32, #tpu.memory_space<vmem>>, vector<1x128xf32>
    %4 = vector.shape_cast %1 : vector<8x8xf32> to vector<8x8x1xf32>
    %5 = vector.broadcast %4 : vector<8x8x1xf32> to vector<8x8x32xf32>
    %6 = arith.mulf %0, %5 : vector<8x8x32xf32>
    %cst = arith.constant dense<0.000000e+00> : vector<8x32xf32>
    %7 = vector.multi_reduction <add>, %6, %cst [1] : vector<8x8x32xf32> to vector<8x32xf32>
    %cst_8 = arith.constant dense<0.000000e+00> : vector<8xf32>
    %8 = vector.multi_reduction <add>, %1, %cst_8 [1] : vector<8x8xf32> to vector<8xf32>
    %9 = vector.shape_cast %8 : vector<8xf32> to vector<8x1xf32>
    %cst_9 = arith.constant 9.99999971E-10 : f32
    %10 = vector.broadcast %cst_9 : f32 to vector<8x1xf32>
    %11 = arith.maximumf %9, %10 : vector<8x1xf32>
    %12 = tpu.reciprocal %11 {approx = true} : vector<8x1xf32> -> vector<8x1xf32>
    %13 = vector.broadcast %12 : vector<8x1xf32> to vector<8x32xf32>
    %14 = arith.mulf %7, %13 : vector<8x32xf32>
    %15 = arith.truncf %14 : vector<8x32xf32> to vector<8x32xbf16>
    %cst_10 = arith.constant dense<0.000000e+00> : vector<8x128xf32>
    %16 = tpu.matmul %15, %2, %cst_10 {dimension_numbers = #tpu.dot_dimension_numbers<[1], [0], [0], [1], [0, 0, 1, 1], [], []>} : vector<8x32xbf16>, vector<32x128xbf16>, vector<8x128xf32> -> vector<8x128xf32>
    %17 = vector.broadcast %3 : vector<1x128xf32> to vector<8x128xf32>
    %18 = arith.addf %16, %17 : vector<8x128xf32>
    %19 = arith.mulf %18, %18 : vector<8x128xf32>
    %cst_11 = arith.constant dense<0.000000e+00> : vector<8xf32>
    %20 = vector.multi_reduction <add>, %19, %cst_11 [1] : vector<8x128xf32> to vector<8xf32>
    %21 = vector.shape_cast %20 : vector<8xf32> to vector<8x1xf32>
    %cst_12 = arith.constant 9.99999996E-13 : f32
    %22 = vector.broadcast %cst_12 : f32 to vector<8x1xf32>
    %23 = arith.addf %21, %22 : vector<8x1xf32>
    %24 = math.rsqrt %23 : vector<8x1xf32>
    %25 = vector.broadcast %24 : vector<8x1xf32> to vector<8x128xf32>
    %26 = arith.mulf %18, %25 : vector<8x128xf32>
    %c0_13 = arith.constant 0 : index
    %c0_14 = arith.constant 0 : index
    %27 = vector.load %arg5[%c0_13, %c0_14] : memref<8x128xf32, #tpu.memory_space<vmem>>, vector<8x128xf32>
    tpu.vector_store %arg5[%c0_13, %c0_14], %26 {strides = array<i32>} : memref<8x128xf32, #tpu.memory_space<vmem>>, vector<8x128xf32>,
    return
  }
  func.func @transform_0(%arg0: i32) -> (i32, i32, i32) {
    %c0_i32 = arith.constant 0 : i32
    %c0_i32_0 = arith.constant 0 : i32
    %c0_i32_1 = arith.constant 0 : i32
    return %arg0, %c0_i32, %c0_i32_0 : i32, i32, i32
  }
  func.func @transform_1(%arg0: i32) -> (i32, i32) {
    %c0_i32 = arith.constant 0 : i32
    %c0_i32_0 = arith.constant 0 : i32
    return %arg0, %c0_i32 : i32, i32
  }
  func.func @transform_2(%arg0: i32) -> (i32, i32) {
    %c0_i32 = arith.constant 0 : i32
    %c0_i32_0 = arith.constant 0 : i32
    %c0_i32_1 = arith.constant 0 : i32
    return %c0_i32, %c0_i32_0 : i32, i32
  }
  func.func @transform_3(%arg0: i32) -> (i32, i32) {
    %c0_i32 = arith.constant 0 : i32
    %c0_i32_0 = arith.constant 0 : i32
    %c0_i32_1 = arith.constant 0 : i32
    return %c0_i32, %c0_i32_0 : i32, i32
  }
  func.func @transform_4(%arg0: i32) -> (i32, i32) {
    %c0_i32 = arith.constant 0 : i32
    %c0_i32_0 = arith.constant 0 : i32
    return %arg0, %c0_i32 : i32, i32
  }
}

</mosaic_0001>

<llo_original>
// kernel: tpu_custom_call.1
$region0: #{tpu_custom_call.1}
  #allocation0 [shape = 'u32[]', space=smem, size = 0x4, offset = 0x4, fixed_abs, tag = 'smem constant byte address 0x4 - core index']
  #allocation1 [shape = 'u32[144,128]{1,0:T(1,128)}', space=vmem, size = 0x12000, scoped, tag = 'internal scratch']
  %s0 = inlined_call_operand.hbm [shape: f32[16,8,32], index: 0, kind: input, shape index: {}]
  %s1 = inlined_call_operand.vmem [shape: f32[16,8], index: 1, kind: input, shape index: {}]
  %s2 = inlined_call_operand.vmem [shape: bf16[32,128], index: 2, kind: input, shape index: {}]
  %s3 = inlined_call_operand.vmem [shape: f32[1,128], index: 3, kind: input, shape index: {}]
  %s4 = inlined_call_operand.hbm [shape: f32[16,128], index: 4, kind: output, shape index: {}]
  %s5 = sld [smem:[#allocation0]]
  $region53: #{tpu_custom_call.1} parent=0
    _
  %s7 = ssub.s32 1, %s5
  %s8 = scalar_select 0, %s7, %s5
  $region1: #{tpu_custom_call.1} parent=0
    #allocation2 [shape = 'u8[65536]{0}', space=vmem, size = 0x10000, scoped, tag = 'input window, operand 0']
    #allocation3 [shape = 's32[2]{0}', space=sflag, size = 0x8, scoped, tag = 'scoped memory for tpu_custom_call.1']
    #allocation4 [shape = 's32[2]{0}', space=sflag, size = 0x8, scoped, tag = 'scoped memory for tpu_custom_call.1']
    #allocation5 [shape = 'u8[8192]{0}', space=vmem, size = 0x2000, scoped, tag = 'output window, operand 0']
    %9 = vsyncpa [#allocation3], 0
    %s10 = scalar_lea.sflag [#allocation3], 1
    %11 = vsyncpa %s10, 0
    %12 = vsyncpa [#allocation4], 0
    %s13 = scalar_lea.sflag [#allocation4], 1
    %14 = vsyncpa %s13, 0
    loop: start=0, step=1, limit=4
    $region2: #{tpu_custom_call.1} parent=1 // loop_pre_header
      _
    $region3: #{tpu_custom_call.1} parent=1 // loop_header
      %s16 = sphi 0, %s20
      %p17 = scmp.ge.s32.totalorder %s16, 4
      %s26 = sphi 0, %s28
      %s29 = sphi 0, %s26
      %s30 = sphi 0, %s29
      %s46 = sphi 0, %s30
      %s52 = sphi 0, %s54
      %s55 = sphi 0, %s52
      %s56 = sphi 0, %s55
      %s72 = sphi 0, %s56
      %s76 = sphi 0, %s76
      %s78 = sphi 0, %s76
      %s79 = sphi 0, %s78
      %s93 = sphi 0, %s79
      %s97 = sphi 0, %s97
      %s99 = sphi 0, %s97
      %s100 = sphi 0, %s99
      %s114 = sphi 0, %s100
      %s120 = sphi 0, %s122
      %s123 = sphi 0, %s120
      %s124 = sphi 0, %s123
      %s140 = sphi 0, %s124
    $region4: #{tpu_custom_call.1} parent=1 // loop_header_branch
      %19 = sbr.rel (%p17) target = $region8
    $region5: #{tpu_custom_call.1} parent=1 // loop_body
      %s21 = ssub.s32 %s16, 1
      %s22 = ssub.s32 %s16, 2
      %s23 = sadd.s32 %s16, 1
      %s24 = ssub.s32 %s16, %s23
      %p25 = scmp.eq.s32.totalorder %s24, 0
      %s27 = sadd.s32 %s26, 1
      %s28 = scalar_select %p25, %s26, %s27
      %p31 = pneg %p25
      %p32 = scmp.eq.s32.totalorder %s16, 1
      %p33 = por %p31, %p32
      %p34 = scmp.ne.s32.totalorder %s26, %s29
      %p35 = scmp.eq.s32.totalorder %s16, 0
      %p36 = por %p34, %p35
      %p37 = scmp.ne.s32.totalorder %s26, %s29
      %p38 = scmp.eq.s32.totalorder %s21, 1
      %p39 = por %p37, %p38
      %p40 = scmp.ne.s32.totalorder %s29, %s30
      %p41 = scmp.eq.s32.totalorder %s21, 0
      %p42 = por %p40, %p41
      %p43 = scmp.ne.s32.totalorder %s29, %s30
      %p44 = scmp.eq.s32.totalorder %s22, 1
      %p45 = por %p43, %p44
      %p47 = scmp.ne.s32.totalorder %s30, %s46
      %p48 = scmp.eq.s32.totalorder %s22, 0
      %p49 = por %p47, %p48
      %s50 = ssub.s32 %s16, %s23
      %p51 = scmp.eq.s32.totalorder %s50, 0
      %s53 = sadd.s32 %s52, 1
      %s54 = scalar_select %p51, %s52, %s53
      %p57 = pneg %p51
      %p58 = scmp.eq.s32.totalorder %s16, 1
      %p59 = por %p57, %p58
      %p60 = scmp.ne.s32.totalorder %s52, %s55
      %p61 = scmp.eq.s32.totalorder %s16, 0
      %p62 = por %p60, %p61
      %p63 = scmp.ne.s32.totalorder %s52, %s55
      %p64 = scmp.eq.s32.totalorder %s21, 1
      %p65 = por %p63, %p64
      %p66 = scmp.ne.s32.totalorder %s55, %s56
      %p67 = scmp.eq.s32.totalorder %s21, 0
      %p68 = por %p66, %p67
      %p69 = scmp.ne.s32.totalorder %s55, %s56
      %p70 = scmp.eq.s32.totalorder %s22, 1
      %p71 = por %p69, %p70
      %p73 = scmp.ne.s32.totalorder %s56, %s72
      %p74 = scmp.eq.s32.totalorder %s22, 0
      %p75 = por %p73, %p74
      %s77 = sadd.s32 %s76, 1
      %p80 = scmp.eq.s32.totalorder %s16, 1
      %p81 = scmp.ne.s32.totalorder %s76, %s78
      %p82 = scmp.eq.s32.totalorder %s16, 0
      %p83 = por %p81, %p82
      %p84 = scmp.ne.s32.totalorder %s76, %s78
      %p85 = scmp.eq.s32.totalorder %s21, 1
      %p86 = por %p84, %p85
      %p87 = scmp.ne.s32.totalorder %s78, %s79
      %p88 = scmp.eq.s32.totalorder %s21, 0
      %p89 = por %p87, %p88
      %p90 = scmp.ne.s32.totalorder %s78, %s79
      %p91 = scmp.eq.s32.totalorder %s22, 1
      %p92 = por %p90, %p91
      %p94 = scmp.ne.s32.totalorder %s79, %s93
      %p95 = scmp.eq.s32.totalorder %s22, 0
      %p96 = por %p94, %p95
      %s98 = sadd.s32 %s97, 1
      %p101 = scmp.eq.s32.totalorder %s16, 1
      %p102 = scmp.ne.s32.totalorder %s97, %s99
      %p103 = scmp.eq.s32.totalorder %s16, 0
      %p104 = por %p102, %p103
      %p105 = scmp.ne.s32.totalorder %s97, %s99
      %p106 = scmp.eq.s32.totalorder %s21, 1
      %p107 = por %p105, %p106
      %p108 = scmp.ne.s32.totalorder %s99, %s100
      %p109 = scmp.eq.s32.totalorder %s21, 0
      %p110 = por %p108, %p109
      %p111 = scmp.ne.s32.totalorder %s99, %s100
      %p112 = scmp.eq.s32.totalorder %s22, 1
      %p113 = por %p111, %p112
      %p115 = scmp.ne.s32.totalorder %s100, %s114
      %p116 = scmp.eq.s32.totalorder %s22, 0
      %p117 = por %p115, %p116
      %s118 = ssub.s32 %s16, %s23
      %p119 = scmp.eq.s32.totalorder %s118, 0
      %s121 = sadd.s32 %s120, 1
      %s122 = scalar_select %p119, %s120, %s121
      %p125 = pneg %p119
      %p126 = scmp.eq.s32.totalorder %s16, 1
      %p127 = por %p125, %p126
      %p128 = scmp.ne.s32.totalorder %s120, %s123
      %p129 = scmp.eq.s32.totalorder %s16, 0
      %p130 = por %p128, %p129
      %p131 = scmp.ne.s32.totalorder %s120, %s123
      %p132 = scmp.eq.s32.totalorder %s21, 1
      %p133 = por %p131, %p132
      %p134 = scmp.ne.s32.totalorder %s123, %s124
      %p135 = scmp.eq.s32.totalorder %s21, 0
      %p136 = por %p134, %p135
      %p137 = scmp.ne.s32.totalorder %s123, %s124
      %p138 = scmp.eq.s32.totalorder %s22, 1
      %p139 = por %p137, %p138
      %p141 = scmp.ne.s32.totalorder %s124, %s140
      %p142 = scmp.eq.s32.totalorder %s22, 0
      %p143 = por %p141, %p142
      %p144 = scmp.le.s32.totalorder 1, %s16
      %p145 = scmp.lt.s32.totalorder %s16, 3
      %p146 = pnand %p144, %p145
      %p147 = pneg %p146
      // Predicated region
      $region9: #{tpu_custom_call.1} parent=5 // pred_check
        _
      $region10: #{tpu_custom_call.1} parent=5 // pred_check_branch
        %149 = sbr.rel (%p146) target = $region12
      $region11: #{tpu_custom_call.1} parent=5 // pred_region
        %s150 = ssub.s32 %s16, 1
        // Predicated region
        $region13: #{tpu_custom_call.1} parent=11 // pred_check
          %p151 = pneg %p89
        $region14: #{tpu_custom_call.1} parent=11 // pred_check_branch
          %153 = sbr.rel (%p151) target = $region16
        $region15: #{tpu_custom_call.1} parent=11 // pred_region
          _
        $region16: #{tpu_custom_call.1} parent=11 // pred_fallthru
          _
        // Predicated region
        $region17: #{tpu_custom_call.1} parent=11 // pred_check
          %p154 = pneg %p110
        $region18: #{tpu_custom_call.1} parent=11 // pred_check_branch
          %156 = sbr.rel (%p154) target = $region20
        $region19: #{tpu_custom_call.1} parent=11 // pred_region
          _
        $region20: #{tpu_custom_call.1} parent=11 // pred_fallthru
          _
      $region12: #{tpu_custom_call.1} parent=5 // pred_fallthru
        _
      %p157 = scmp.lt.s32.totalorder %s16, 2
      // Predicated region
      $region21: #{tpu_custom_call.1} parent=5 // pred_check
        %p158 = pneg %p157
      $region22: #{tpu_custom_call.1} parent=5 // pred_check_branch
        %160 = sbr.rel (%p158) target = $region24
      $region23: #{tpu_custom_call.1} parent=5 // pred_region
        // Predicated region
        $region25: #{tpu_custom_call.1} parent=23 // pred_check
          %p161 = pneg %p36
        $region26: #{tpu_custom_call.1} parent=23 // pred_check_branch
          %163 = sbr.rel (%p161) target = $region28
        $region27: #{tpu_custom_call.1} parent=23 // pred_region
          %s164 = sand.u32 %s26, 1
          %s165 = scalar_lea.sflag [#allocation3], %s164
          %s166 = sand.u32 %s26, 1
          %s167 = smul.addr %s166, 64
          %s168 = scalar_lea.vmem [#allocation2], %s167
          %s169 = smul.u32 8, %s16
          %s171 = ssub.s32 1024, 1024
          %172 = vsyncadd %s165, %s171
          %s173 = smul.addr %s169, 128
          %s174 = scalar_lea.hbm %s0, %s173
          %s175 = sshll.u32 %s168, 4
          %s176 = int_to_ptr.vmem [resolvable:$true] %s175
          %181 = dma.hbm_to_vmem [thread:$0]  %s174, 1024, %s176, %s165, 128, 128, 8
        $region28: #{tpu_custom_call.1} parent=23 // pred_fallthru
          _
        // Predicated region
        $region29: #{tpu_custom_call.1} parent=23 // pred_check
          %p182 = pneg %p62
        $region30: #{tpu_custom_call.1} parent=23 // pred_check_branch
          %184 = sbr.rel (%p182) target = $region32
        $region31: #{tpu_custom_call.1} parent=23 // pred_region
          %p185 = scmp.lt.s32.totalorder %s16, 1
          %s186 = scalar_select %p185, %s16, 1
          %s187 = smul.addr %s186, 8
          %s188 = scalar_lea.vmem %s1, %s187
        $region32: #{tpu_custom_call.1} parent=23 // pred_fallthru
          _
      $region24: #{tpu_custom_call.1} parent=5 // pred_fallthru
        _
      %p189 = scmp.le.s32.totalorder 1, %s16
      %p190 = scmp.lt.s32.totalorder %s16, 3
      %p191 = pnand %p189, %p190
      %p192 = pneg %p191
      // Predicated region
      $region33: #{tpu_custom_call.1} parent=5 // pred_check
        _
      $region34: #{tpu_custom_call.1} parent=5 // pred_check_branch
        %194 = sbr.rel (%p191) target = $region36
      $region35: #{tpu_custom_call.1} parent=5 // pred_region
        %s195 = ssub.s32 %s16, 1
        %s196 = sand.u32 %s29, 1
        %s197 = scalar_lea.sflag [#allocation3], %s196
        %s198 = sand.u32 %s29, 1
        %s199 = smul.addr %s198, 64
        %s200 = scalar_lea.vmem [#allocation2], %s199
        // Predicated region
        $region37: #{tpu_custom_call.1} parent=35 // pred_check
          %p201 = pneg %p42
        $region38: #{tpu_custom_call.1} parent=35 // pred_check_branch
          %203 = sbr.rel (%p201) target = $region40
        $region39: #{tpu_custom_call.1} parent=35 // pred_region
          %204 = dma.done %s197, 1024
        $region40: #{tpu_custom_call.1} parent=35 // pred_fallthru
          _
        %s205 = sand.u32 %s29, 1
        %s206 = scalar_lea.sflag [#allocation3], %s205
        %s207 = sand.u32 %s29, 1
        %s208 = smul.addr %s207, 64
        %s209 = scalar_lea.vmem [#allocation2], %s208
        %p210 = pneg %p42
        %p211 = pneg %p39
        %p212 = scmp.lt.s32.totalorder %s21, 1
        %s213 = scalar_select %p212, %s21, 1
        %s214 = smul.addr %s213, 8
        %s215 = scalar_lea.vmem %s1, %s214
        %p216 = pneg %p68
        %p217 = pneg %p65
        %p218 = pneg %p89
        %p219 = pneg %p86
        %p220 = pneg %p110
        %p221 = pneg %p107
        %p222 = pneg %p136
        %p223 = pneg %p133
        %s224 = sand.u32 %s123, 1
        %s225 = scalar_lea.sflag [#allocation4], %s224
        %s226 = sand.u32 %s123, 1
        %s227 = smul.addr %s226, 8
        %s228 = scalar_lea.vmem [#allocation5], %s227
        %s229 = smul.u32 8, %s21
        %p230 = scmp.lt.s32.totalorder %s21, 1
        %s231 = scalar_select %p230, %s21, 1
        %s232 = smul.addr %s231, 8
        %s233 = scalar_lea.vmem %s1, %s232
        %v235 = vld [vmem:[%s200] sm:$0xff]
        %v236 = vld [vmem:[%s200 + $0x8] sm:$0xff]
        %v237 = vld [vmem:[%s200 + $0x10] sm:$0xff]
        %v238 = vld [vmem:[%s200 + $0x18] sm:$0xff]
        %v239 = vld [vmem:[%s200 + $0x20] sm:$0xff]
        %v240 = vld [vmem:[%s200 + $0x28] sm:$0xff]
        %v241 = vld [vmem:[%s200 + $0x30] sm:$0xff]
        %v242 = vld [vmem:[%s200 + $0x38] sm:$0xff]
        %v243 = vld [vmem:[%s233] sm:$0xff]
        %v244 = vld [vmem:[%s2] sm:$0xf]
        %v245 = vld [vmem:[%s2 + $0x4] sm:$0xf]
        %v246 = vld [vmem:[%s2 + $0x8] sm:$0xf]
        %v247 = vld [vmem:[%s2 + $0xc] sm:$0xf]
        %v248 = vld [vmem:[%s3] sm:$0x1]
        %v249 = vlaneseq
        %v250 = vshrl.u32 %v249, 7
        %v251 = vsub.s32 0, %v250
        %v252 = vrot.slane %v243, %v251
        %254 = vbcast.lane.b32.xlu0 %v252, 256
        %v255 = vpop.permute.xlu0 %254
        %v256 = vlaneseq
        %v257 = vshrl.u32 %v256, 7
        %v258 = vsub.s32 1, %v257
        %v259 = vrot.slane %v243, %v258
        %261 = vbcast.lane.b32.xlu0 %v259, 256
        %v262 = vpop.permute.xlu0 %261
        %v263 = vlaneseq
        %v264 = vshrl.u32 %v263, 7
        %v265 = vsub.s32 2, %v264
        %v266 = vrot.slane %v243, %v265
        %268 = vbcast.lane.b32.xlu0 %v266, 256
        %v269 = vpop.permute.xlu0 %268
        %v270 = vlaneseq
        %v271 = vshrl.u32 %v270, 7
        %v272 = vsub.s32 3, %v271
        %v273 = vrot.slane %v243, %v272
        %275 = vbcast.lane.b32.xlu0 %v273, 256
        %v276 = vpop.permute.xlu0 %275
        %v277 = vlaneseq
        %v278 = vshrl.u32 %v277, 7
        %v279 = vsub.s32 4, %v278
        %v280 = vrot.slane %v243, %v279
        %282 = vbcast.lane.b32.xlu0 %v280, 256
        %v283 = vpop.permute.xlu0 %282
        %v284 = vlaneseq
        %v285 = vshrl.u32 %v284, 7
        %v286 = vsub.s32 5, %v285
        %v287 = vrot.slane %v243, %v286
        %289 = vbcast.lane.b32.xlu0 %v287, 256
        %v290 = vpop.permute.xlu0 %289
        %v291 = vlaneseq
        %v292 = vshrl.u32 %v291, 7
        %v293 = vsub.s32 6, %v292
        %v294 = vrot.slane %v243, %v293
        %296 = vbcast.lane.b32.xlu0 %v294, 256
        %v297 = vpop.permute.xlu0 %296
        %v298 = vlaneseq
        %v299 = vshrl.u32 %v298, 7
        %v300 = vsub.s32 7, %v299
        %v301 = vrot.slane %v243, %v300
        %303 = vbcast.lane.b32.xlu0 %v301, 256
        %v304 = vpop.permute.xlu0 %303
        %v305 = vmul.f32 %v235, %v255
        %v306 = vmul.f32 %v236, %v262
        %v307 = vmul.f32 %v237, %v269
        %v308 = vmul.f32 %v238, %v276
        %v309 = vmul.f32 %v239, %v283
        %v310 = vmul.f32 %v240, %v290
        %v311 = vmul.f32 %v241, %v297
        %v312 = vmul.f32 %v242, %v304
        %vm313 = vcmask 261120
        %v314 = vsel %vm313, %v305, 0.0
        %v315 = vrot.slane %v314, 4
        %v316 = vadd.f32 %v314, %v315
        %v317 = vrot.slane %v316, 2
        %v318 = vadd.f32 %v316, %v317
        %v319 = vrot.slane %v318, 1
        %v320 = vadd.f32 %v318, %v319
        %v321 = vsel %vm313, %v306, 0.0
        %v322 = vrot.slane %v321, 4
        %v323 = vadd.f32 %v321, %v322
        %v324 = vrot.slane %v323, 2
        %v325 = vadd.f32 %v323, %v324
        %v326 = vrot.slane %v325, 1
        %v327 = vadd.f32 %v325, %v326
        %v328 = vsel %vm313, %v307, 0.0
        %v329 = vrot.slane %v328, 4
        %v330 = vadd.f32 %v328, %v329
        %v331 = vrot.slane %v330, 2
        %v332 = vadd.f32 %v330, %v331
        %v333 = vrot.slane %v332, 1
        %v334 = vadd.f32 %v332, %v333
        %v335 = vsel %vm313, %v308, 0.0
        %v336 = vrot.slane %v335, 4
        %v337 = vadd.f32 %v335, %v336
        %v338 = vrot.slane %v337, 2
        %v339 = vadd.f32 %v337, %v338
        %v340 = vrot.slane %v339, 1
        %v341 = vadd.f32 %v339, %v340
        %v342 = vsel %vm313, %v309, 0.0
        %v343 = vrot.slane %v342, 4
        %v344 = vadd.f32 %v342, %v343
        %v345 = vrot.slane %v344, 2
        %v346 = vadd.f32 %v344, %v345
        %v347 = vrot.slane %v346, 1
        %v348 = vadd.f32 %v346, %v347
        %v349 = vsel %vm313, %v310, 0.0
        %v350 = vrot.slane %v349, 4
        %v351 = vadd.f32 %v349, %v350
        %v352 = vrot.slane %v351, 2
        %v353 = vadd.f32 %v351, %v352
        %v354 = vrot.slane %v353, 1
        %v355 = vadd.f32 %v353, %v354
        %v356 = vsel %vm313, %v311, 0.0
        %v357 = vrot.slane %v356, 4
        %v358 = vadd.f32 %v356, %v357
        %v359 = vrot.slane %v358, 2
        %v360 = vadd.f32 %v358, %v359
        %v361 = vrot.slane %v360, 1
        %v362 = vadd.f32 %v360, %v361
        %v363 = vsel %vm313, %v312, 0.0
        %v364 = vrot.slane %v363, 4
        %v365 = vadd.f32 %v363, %v364
        %v366 = vrot.slane %v365, 2
        %v367 = vadd.f32 %v365, %v366
        %v368 = vrot.slane %v367, 1
        %v369 = vadd.f32 %v367, %v368
        %vm370 = vcmask 64512
        %v371 = vsel %vm370, %v243, 0.0
        %372 = vadd.xlane.f32.xlu0 %v371
        %v373 = vpop.xlane.xlu0 %372
        %v374 = vmax.f32 %v373, 1e-09
        %v375 = vrcp.pop %v374
        %v377 = vrot.slane %v375, 1
        %v378 = vrot.slane %v375, 2
        %v379 = vrot.slane %v375, 3
        %v380 = vrot.slane %v375, 4
        %v381 = vrot.slane %v375, 5
        %v382 = vrot.slane %v375, 6
        %v383 = vrot.slane %v375, 7
        %v392 = vmul.f32 %v320, %v375
        %v393 = vmul.f32 %v327, %v377
        %v394 = vmul.f32 %v334, %v378
        %v395 = vmul.f32 %v341, %v379
        %v396 = vmul.f32 %v348, %v380
        %v397 = vmul.f32 %v355, %v381
        %v398 = vmul.f32 %v362, %v382
        %v399 = vmul.f32 %v369, %v383
        %v400 = vpack.c.bf16 %v392, %v392
        %v401 = vpack.c.bf16 %v393, %v393
        %v402 = vpack.c.bf16 %v394, %v394
        %v403 = vpack.c.bf16 %v395, %v395
        %v404 = vpack.c.bf16 %v396, %v396
        %v405 = vpack.c.bf16 %v397, %v397
        %v406 = vpack.c.bf16 %v398, %v398
        %v407 = vpack.c.bf16 %v399, %v399
        %v409 = vlaneseq
        %v410 = vshrl.u32 %v409, 7
        %v411 = vsub.s32 0, %v410
        %v412 = vrot.slane %v248, %v411
        %v422 = vunpack.c.l.b16 %v400
        %v423 = vunpack.c.l.b16 %v401
        %v424 = vunpack.c.l.b16 %v402
        %v425 = vunpack.c.l.b16 %v403
        %v426 = vunpack.c.l.b16 %v404
        %v427 = vunpack.c.l.b16 %v405
        %v428 = vunpack.c.l.b16 %v406
        %v429 = vunpack.c.l.b16 %v407
        %v430 = vrot.slane %v423, 7
        %vm431 = vcmask 1041409
        %v432 = vsel %vm431, %v430, %v422
        %v433 = vrot.slane %v424, 6
        %vm434 = vcmask 1042434
        %v435 = vsel %vm434, %v433, %v432
        %v436 = vrot.slane %v425, 5
        %vm437 = vcmask 1043459
        %v438 = vsel %vm437, %v436, %v435
        %v439 = vrot.slane %v426, 4
        %vm440 = vcmask 1044484
        %v441 = vsel %vm440, %v439, %v438
        %v442 = vrot.slane %v427, 3
        %vm443 = vcmask 1045509
        %v444 = vsel %vm443, %v442, %v441
        %v445 = vrot.slane %v428, 2
        %vm446 = vcmask 1046534
        %v447 = vsel %vm446, %v445, %v444
        %v448 = vrot.slane %v429, 1
        %vm449 = vcmask 1047559
        %v450 = vsel %vm449, %v448, %v447
        %v451 = vpack.c.b16 %v450, %v450
        %v456 = vunpack.c.l.b16 %v244
        %v457 = vunpack.c.l.b16 %v245
        %v458 = vunpack.c.l.b16 %v246
        %v459 = vunpack.c.l.b16 %v247
        %v460 = vpack.c.b16 %v457, %v456
        %v461 = vpack.c.b16 %v459, %v458
        %v465 = vsel %vm313, %v451, 0
        %467 = vmatprep.subr.bf16.mxu0 0
        %468 = vmatpush1.bf16.msra.mxu0 %v460
        %469 = vmatprep.subr.bf16.mxu0 0
        %470 = vmatpush1.bf16.msra.mxu0 %v461
        %471 = vmatprep.subr.bf16.mxu0 0
        %472 = vmatpush1.bf16.msra.mxu0 0
        %473 = vmatprep.subr.bf16.mxu0 0
        %474 = vmatpush1.bf16.msra.mxu0 0
        %475 = vmatprep.subr.bf16.mxu0 0
        %476 = vmatpush1.bf16.msra.mxu0 0
        %477 = vmatprep.subr.bf16.mxu0 0
        %478 = vmatpush1.bf16.msra.mxu0 0
        %479 = vmatprep.subr.bf16.mxu0 0
        %480 = vmatpush1.bf16.msra.mxu0 0
        %481 = vmatprep.subr.bf16.mxu0 0
        %482 = vmatpush1.bf16.msra.mxu0 0
        %483 = vmatprep.subr.bf16.mxu0 0
        %484 = vmatpush1.bf16.msra.mxu0 0
        %485 = vmatprep.subr.bf16.mxu0 0
        %486 = vmatpush1.bf16.msra.mxu0 0
        %487 = vmatprep.subr.bf16.mxu0 0
        %488 = vmatpush1.bf16.msra.mxu0 0
        %489 = vmatprep.subr.bf16.mxu0 0
        %490 = vmatpush1.bf16.msra.mxu0 0
        %491 = vmatprep.subr.bf16.mxu0 0
        %492 = vmatpush1.bf16.msra.mxu0 0
        %493 = vmatprep.subr.bf16.mxu0 0
        %494 = vmatpush1.bf16.msra.mxu0 0
        %495 = vmatprep.subr.bf16.mxu0 0
        %496 = vmatpush1.bf16.msra.mxu0 0
        %497 = vmatprep.subr.bf16.mxu0 0
        %498 = vmatpush1.bf16.msra.mxu0 0
        %499 = vmatprep.mubr.bf16.mxu0 0
        %500 = vmatmul.mubr.bf16.gmra.mrb[0].mxu0 %v465
        %v501 = vpop.f32.mrb[0].mxu0
        %v502 = vadd.f32 %v412, %v501
        %v503 = vpop.f32.mrb[0].mxu0
        %v504 = vpop.f32.mrb[0].mxu0
        %v505 = vpop.f32.mrb[0].mxu0
        %506 = vdwg.mxu0
        %v507 = vmul.f32 %v502, %v502
        %508 = vadd.xlane.f32.xlu0 %v507
        %v509 = vpop.xlane.xlu0 %508
        %v510 = vadd.f32 %v509, 1e-12
        %v511 = vrsqrt.pop %v510
        %v512 = vmul.f32 %v502, %v511
        %513 = vst [vmem:[%s228] sm:$0xff] %v512
        %s514 = sand.u32 %s123, 1
        %s515 = scalar_lea.sflag [#allocation4], %s514
        %s516 = sand.u32 %s123, 1
        %s517 = smul.addr %s516, 8
        %s518 = scalar_lea.vmem [#allocation5], %s517
        // Predicated region
        $region41: #{tpu_custom_call.1} parent=35 // pred_check
          %p519 = pneg %p133
        $region42: #{tpu_custom_call.1} parent=35 // pred_check_branch
          %521 = sbr.rel (%p519) target = $region44
        $region43: #{tpu_custom_call.1} parent=35 // pred_region
          %s523 = ssub.s32 128, 128
          %524 = vsyncadd %s515, %s523
          %s525 = smul.addr %s21, 128
          %s526 = scalar_lea.hbm %s4, %s525
          %s528 = sshll.u32 %s518, 4
          %s529 = int_to_ptr.vmem [resolvable:$true] %s528
          %531 = dma.vmem_to_hbm [thread:$0]  %s529, 128, %s526, %s515
        $region44: #{tpu_custom_call.1} parent=35 // pred_fallthru
          _
      $region36: #{tpu_custom_call.1} parent=5 // pred_fallthru
        _
      %p532 = scmp.le.s32.totalorder 2, %s16
      // Predicated region
      $region45: #{tpu_custom_call.1} parent=5 // pred_check
        %p533 = pneg %p532
      $region46: #{tpu_custom_call.1} parent=5 // pred_check_branch
        %535 = sbr.rel (%p533) target = $region48
      $region47: #{tpu_custom_call.1} parent=5 // pred_region
        %s536 = ssub.s32 %s16, 2
        // Predicated region
        $region49: #{tpu_custom_call.1} parent=47 // pred_check
          %p537 = pneg %p139
        $region50: #{tpu_custom_call.1} parent=47 // pred_check_branch
          %539 = sbr.rel (%p537) target = $region52
        $region51: #{tpu_custom_call.1} parent=47 // pred_region
          %s540 = sand.u32 %s124, 1
          %s541 = scalar_lea.sflag [#allocation4], %s540
          %s542 = sand.u32 %s124, 1
          %s543 = smul.addr %s542, 8
          %s544 = scalar_lea.vmem [#allocation5], %s543
          %545 = dma.done %s541, 128
        $region52: #{tpu_custom_call.1} parent=47 // pred_fallthru
          _
      $region48: #{tpu_custom_call.1} parent=5 // pred_fallthru
        _
    $region6: #{tpu_custom_call.1} parent=1 // loop_footer
      %s20 = sadd.s32 1, %s16
    $region7: #{tpu_custom_call.1} parent=1 // loop_footer_branch
      %15 = sbr.rel target = $region3
    $region8: #{tpu_custom_call.1} parent=1 // loop_exit
      _
    %546 = vsyncpa [#allocation3], 1
    %s547 = scalar_lea.sflag [#allocation3], 1
    %548 = vsyncpa %s547, 1
    %549 = vsyncpa [#allocation4], 1
    %s550 = scalar_lea.sflag [#allocation4], 1
    %551 = vsyncpa %s550, 1

</llo_original>
